<compile_context>
chip_gen: v7x
topology: tpu7x:2x2x1
jax: 0.10.0
libtpu: 0.0.40
codegen_flags: <defaults>
</compile_context>

<pallas_src>
import functools
import math

import jax
import jax.numpy as jnp
from jax import lax
from jax.experimental import pallas as pl
from jax.experimental.pallas import tpu as pltpu


def _equal_conv2d_kernel(p_ref, w_ref, b_ref, out_ref, *, scale, batch_tile):
    """One batch-block of the equalized conv as an MXU matmul.

    p_ref:   (TB, R, L)  im2col patches for this batch block
    w_ref:   (K,  R)     unscaled weight, flattened over (C_in, kh, kw)
    b_ref:   (K,  1)     bias (zeros if the layer has no bias)
    out_ref: (TB, K, L)  output block (NC(HW) with HW flattened -> lane-dense)
    """
    w = w_ref[...].astype(jnp.float32) * scale          # equalized-lr scaling
    bias = b_ref[...].astype(jnp.float32)               # (K, 1)
    for i in range(batch_tile):                         # static unroll: TB matmuls
        acc = jnp.dot(w, p_ref[i].astype(jnp.float32),
                      preferred_element_type=jnp.float32)   # (K, L) on the MXU
        out_ref[i] = (acc + bias).astype(out_ref.dtype)


def equal_conv2d_forward(x, weight, bias=None, stride=1, padding=0,
                         first_k_oup=None):
    """Replicates EqualConv2d.forward.

    x:      (N, C_in, H, W)
    weight: (out_channel, in_channel_full, k, k)  -- unscaled nn.Parameter
    bias:   (out_channel,) or None
    """
    n, c_in, h, w_in = x.shape

    # scale is fixed at init: uses the *full* in_channel and kernel_size.
    scale = 1.0 / math.sqrt(weight.shape[1] * weight.shape[2] ** 2)

    # Optional output-channel slice, then input-channel slice (anycost GAN).
    w_used = weight
    if first_k_oup is not None:
        w_used = w_used[: int(first_k_oup)]
    w_used = w_used[:, :c_in]
    k_out, _, kh, kw = w_used.shape

    ho = (h + 2 * padding - kh) // stride + 1
    wo = (w_in + 2 * padding - kw) // stride + 1
    assert ho > 0 and wo > 0
    r = c_in * kh * kw
    l = ho * wo

    # ---- wrapper-side layout plumbing: zero pad + im2col ------------------
    xp = jnp.pad(x, ((0, 0), (0, 0), (padding, padding), (padding, padding)))
    taps = []
    for i in range(kh):
        for j in range(kw):
            taps.append(xp[:, :, i:i + stride * ho:stride,
                           j:j + stride * wo:stride])        # (N, C, Ho, Wo)
    # Order (c, i, j) matches weight.reshape(K, C*kh*kw).
    patches = jnp.stack(taps, axis=2).reshape(n, r, l)        # (N, R, L)

    w2 = w_used.reshape(k_out, r)                             # (K, R)
    if bias is None:
        b2 = jnp.zeros((k_out, 1), dtype=x.dtype)
    else:
        # Slice bias to the kept output channels (sensible first_k_oup behavior).
        b2 = bias[:k_out].reshape(k_out, 1).astype(x.dtype)

    # ---- batch-tile selection (amortize grid overhead, respect VMEM) ------
    elem_bytes = jnp.dtype(x.dtype).itemsize
    per_batch_bytes = (r * l + k_out * l) * elem_bytes * 2    # dbl-buffered in/out
    budget = 8 * 1024 * 1024                                  # safe on v7x 64MiB VMEM
    max_tb = max(1, budget // max(1, per_batch_bytes))
    if n >= 2:
        max_tb = min(max_tb, n // 2)      # keep >= 2 grid steps (v7x has 2 TCs)
    max_tb = int(max(1, min(max_tb, n)))
    tb = 1
    for cand in range(max_tb, 0, -1):
        if n % cand == 0:
            tb = cand
            break
    grid = (n // tb,)

    kernel = functools.partial(_equal_conv2d_kernel, scale=scale, batch_tile=tb)
    flops = 2 * n * k_out * r * l
    bytes_accessed = (n * r * l + k_out * r + k_out + n * k_out * l) * elem_bytes

    out_flat = pl.pallas_call(
        kernel,
        out_shape=jax.ShapeDtypeStruct((n, k_out, l), x.dtype),
        grid_spec=pltpu.PrefetchScalarGridSpec(
            num_scalar_prefetch=0,
            grid=grid,
            in_specs=[
                pl.BlockSpec((tb, r, l), lambda b: (b, 0, 0)),     # patches
                pl.BlockSpec((k_out, r), lambda b: (0, 0)),        # weight
                pl.BlockSpec((k_out, 1), lambda b: (0, 0)),        # bias
            ],
            out_specs=pl.BlockSpec((tb, k_out, l), lambda b: (b, 0, 0)),
        ),
        compiler_params=pltpu.CompilerParams(
            dimension_semantics=("parallel",),
        ),
        cost_estimate=pl.CostEstimate(
            flops=flops, transcendentals=0, bytes_accessed=bytes_accessed),
    )(patches, w2, b2)

    return out_flat.reshape(n, k_out, ho, wo)


if __name__ == "__main__":
    key = jax.random.PRNGKey(0)
    k1, k2, k3 = jax.random.split(key, 3)

    batch, in_ch, out_ch, ksize, spatial = 2, 4, 8, 3, 16
    x = jax.random.normal(k1, (batch, in_ch, spatial, spatial), dtype=jnp.float32)
    weight = jax.random.normal(k2, (out_ch, in_ch, ksize, ksize), dtype=jnp.float32)
    bias = jax.random.normal(k3, (out_ch,), dtype=jnp.float32)

    scale = 1.0 / math.sqrt(in_ch * ksize ** 2)

    def ref_conv(x, w, b, stride, padding, first_k=None):
        wk = w if first_k is None else w[:first_k]
        wk = wk[:, : x.shape[1]]
        out = lax.conv_general_dilated(
            x, wk * scale, window_strides=(stride, stride),
            padding=[(padding, padding), (padding, padding)],
            dimension_numbers=("NCHW", "OIHW", "NCHW"),
            precision=lax.Precision.HIGHEST)
        if b is not None:
            out = out + b[: wk.shape[0]][None, :, None, None]
        return out

    # Case 1: stride=1, padding=1 -> 16x16 output (lane dim Ho*Wo = 256).
    out = jax.block_until_ready(
        equal_conv2d_forward(x, weight, bias, stride=1, padding=1))
    ref = ref_conv(x, weight, bias, 1, 1)
    assert out.shape == ref.shape
    assert jnp.allclose(out, ref, rtol=2e-3, atol=2e-3), \
        float(jnp.max(jnp.abs(out - ref)))

    # Case 2: first_k_oup channel slicing + stride=2, no padding.
    out_k = jax.block_until_ready(
        equal_conv2d_forward(x, weight, bias, stride=2, padding=0, first_k_oup=5))
    ref_k = ref_conv(x, weight, bias, 2, 0, first_k=5)
    assert out_k.shape == ref_k.shape
    assert jnp.allclose(out_k, ref_k, rtol=2e-3, atol=2e-3), \
        float(jnp.max(jnp.abs(out_k - ref_k)))

    print("KERNEL_OK")
</pallas_src>

<mosaic_0001>
module attributes {stable_mosaic.version = 11 : i64} {
  func.func @_equal_conv2d_kernel(%arg0: i32, %arg1: memref<1x36x256xf32, #tpu.memory_space<vmem>>, %arg2: memref<8x36xf32, #tpu.memory_space<vmem>>, %arg3: memref<8x1xf32, #tpu.memory_space<vmem>>, %arg4: memref<1x8x256xf32, #tpu.memory_space<vmem>>) attributes {dimension_semantics = [#tpu.dimension_semantics<parallel>], iteration_bounds = array<i64: 2>, scalar_prefetch = 0 : i64, scratch_operands = 0 : i64, tpu.core_type = #tpu.core_type<tc>, window_params = [{transform_indices = @transform_0, window_bounds = array<i64: 1, 36, 256>}, {pipeline_mode = #tpu.pipeline_mode<synchronous>, transform_indices = @transform_1, window_bounds = array<i64: 8, 36>}, {pipeline_mode = #tpu.pipeline_mode<synchronous>, transform_indices = @transform_2, window_bounds = array<i64: 8, 1>}, {transform_indices = @transform_3, window_bounds = array<i64: 1, 8, 256>}]} {
    %c0 = arith.constant 0 : index
    %c0_0 = arith.constant 0 : index
    %0 = vector.load %arg2[%c0, %c0_0] : memref<8x36xf32, #tpu.memory_space<vmem>>, vector<8x36xf32>
    %cst = arith.constant 0.166666672 : f32
    %1 = vector.broadcast %cst : f32 to vector<8x36xf32>
    %2 = arith.mulf %0, %1 : vector<8x36xf32>
    %c0_1 = arith.constant 0 : index
    %c0_2 = arith.constant 0 : index
    %3 = vector.load %arg3[%c0_1, %c0_2] : memref<8x1xf32, #tpu.memory_space<vmem>>, vector<8x1xf32>
    %c0_3 = arith.constant 0 : index
    %c0_4 = arith.constant 0 : index
    %c0_5 = arith.constant 0 : index
    %4 = vector.load %arg1[%c0_3, %c0_4, %c0_5] : memref<1x36x256xf32, #tpu.memory_space<vmem>>, vector<1x36x256xf32>
    %5 = vector.shape_cast %4 : vector<1x36x256xf32> to vector<36x256xf32>
    %cst_6 = arith.constant dense<0.000000e+00> : vector<8x256xf32>
    %6 = tpu.matmul %2, %5, %cst_6 {dimension_numbers = #tpu.dot_dimension_numbers<[1], [0], [0], [1], [0, 0, 1, 1], [], []>} : vector<8x36xf32>, vector<36x256xf32>, vector<8x256xf32> -> vector<8x256xf32>
    %7 = vector.broadcast %3 : vector<8x1xf32> to vector<8x256xf32>
    %8 = arith.addf %6, %7 : vector<8x256xf32>
    %c0_7 = arith.constant 0 : index
    %c0_8 = arith.constant 0 : index
    %c0_9 = arith.constant 0 : index
    %9 = vector.load %arg4[%c0_7, %c0_8, %c0_9] : memref<1x8x256xf32, #tpu.memory_space<vmem>>, vector<1x8x256xf32>
    %10 = vector.shape_cast %9 : vector<1x8x256xf32> to vector<8x256xf32>
    %11 = vector.shape_cast %8 : vector<8x256xf32> to vector<1x8x256xf32>
    tpu.vector_store %arg4[%c0_7, %c0_8, %c0_9], %11 {strides = array<i32>} : memref<1x8x256xf32, #tpu.memory_space<vmem>>, vector<1x8x256xf32>,
    return
  }
  func.func @transform_0(%arg0: i32) -> (i32, i32, i32) {
    %c0_i32 = arith.constant 0 : i32
    %c0_i32_0 = arith.constant 0 : i32
    %c0_i32_1 = arith.constant 0 : i32
    return %arg0, %c0_i32, %c0_i32_0 : i32, i32, i32
  }
  func.func @transform_1(%arg0: i32) -> (i32, i32) {
    %c0_i32 = arith.constant 0 : i32
    %c0_i32_0 = arith.constant 0 : i32
    %c0_i32_1 = arith.constant 0 : i32
    return %c0_i32, %c0_i32_0 : i32, i32
  }
  func.func @transform_2(%arg0: i32) -> (i32, i32) {
    %c0_i32 = arith.constant 0 : i32
    %c0_i32_0 = arith.constant 0 : i32
    %c0_i32_1 = arith.constant 0 : i32
    return %c0_i32, %c0_i32_0 : i32, i32
  }
  func.func @transform_3(%arg0: i32) -> (i32, i32, i32) {
    %c0_i32 = arith.constant 0 : i32
    %c0_i32_0 = arith.constant 0 : i32
    %c0_i32_1 = arith.constant 0 : i32
    return %arg0, %c0_i32, %c0_i32_0 : i32, i32, i32
  }
}

</mosaic_0001>

<llo_original>
// kernel: tpu_custom_call.1
$region0: #{tpu_custom_call.1}
  #allocation0 [shape = 'u32[]', space=smem, size = 0x4, offset = 0x4, fixed_abs, tag = 'smem constant byte address 0x4 - core index']
  #allocation1 [shape = 'u32[144,128]{1,0:T(1,128)}', space=vmem, size = 0x12000, scoped, tag = 'internal scratch']
  %s0 = inlined_call_operand.vmem [shape: f32[2,36,256], index: 0, kind: input, shape index: {}]
  %s1 = inlined_call_operand.vmem [shape: f32[8,36], index: 1, kind: input, shape index: {}]
  %s2 = inlined_call_operand.vmem [shape: f32[8,1], index: 2, kind: input, shape index: {}]
  %s3 = inlined_call_operand.hbm [shape: f32[2,8,256], index: 3, kind: output, shape index: {}]
  %s4 = sld [smem:[#allocation0]]
  $region45: #{tpu_custom_call.1} parent=0
    _
  %s6 = ssub.s32 1, %s4
  %s7 = scalar_select 0, %s6, %s4
  $region1: #{tpu_custom_call.1} parent=0
    #allocation2 [shape = 'u8[16384]{0}', space=vmem, size = 0x4000, scoped, tag = 'output window, operand 0']
    #allocation3 [shape = 's32[2]{0}', space=sflag, size = 0x8, scoped, tag = 'scoped memory for tpu_custom_call.1']
    %8 = vsyncpa [#allocation3], 0
    %s9 = scalar_lea.sflag [#allocation3], 1
    %10 = vsyncpa %s9, 0
    loop: start=0, step=1, limit=4
    $region2: #{tpu_custom_call.1} parent=1 // loop_pre_header
      _
    $region3: #{tpu_custom_call.1} parent=1 // loop_header
      %s12 = sphi 0, %s16
      %p13 = scmp.ge.s32.totalorder %s12, 4
      %s22 = sphi 0, %s24
      %s25 = sphi 0, %s22
      %s26 = sphi 0, %s25
      %s42 = sphi 0, %s26
      %s46 = sphi 0, %s46
      %s48 = sphi 0, %s46
      %s49 = sphi 0, %s48
      %s63 = sphi 0, %s49
      %s67 = sphi 0, %s67
      %s69 = sphi 0, %s67
      %s70 = sphi 0, %s69
      %s84 = sphi 0, %s70
      %s90 = sphi 0, %s92
      %s93 = sphi 0, %s90
      %s94 = sphi 0, %s93
      %s110 = sphi 0, %s94
    $region4: #{tpu_custom_call.1} parent=1 // loop_header_branch
      %15 = sbr.rel (%p13) target = $region8
    $region5: #{tpu_custom_call.1} parent=1 // loop_body
      %s17 = ssub.s32 %s12, 1
      %s18 = ssub.s32 %s12, 2
      %s19 = sadd.s32 %s12, 1
      %s20 = ssub.s32 %s12, %s19
      %p21 = scmp.eq.s32.totalorder %s20, 0
      %s23 = sadd.s32 %s22, 1
      %s24 = scalar_select %p21, %s22, %s23
      %p27 = pneg %p21
      %p28 = scmp.eq.s32.totalorder %s12, 1
      %p29 = por %p27, %p28
      %p30 = scmp.ne.s32.totalorder %s22, %s25
      %p31 = scmp.eq.s32.totalorder %s12, 0
      %p32 = por %p30, %p31
      %p33 = scmp.ne.s32.totalorder %s22, %s25
      %p34 = scmp.eq.s32.totalorder %s17, 1
      %p35 = por %p33, %p34
      %p36 = scmp.ne.s32.totalorder %s25, %s26
      %p37 = scmp.eq.s32.totalorder %s17, 0
      %p38 = por %p36, %p37
      %p39 = scmp.ne.s32.totalorder %s25, %s26
      %p40 = scmp.eq.s32.totalorder %s18, 1
      %p41 = por %p39, %p40
      %p43 = scmp.ne.s32.totalorder %s26, %s42
      %p44 = scmp.eq.s32.totalorder %s18, 0
      %p45 = por %p43, %p44
      %s47 = sadd.s32 %s46, 1
      %p50 = scmp.eq.s32.totalorder %s12, 1
      %p51 = scmp.ne.s32.totalorder %s46, %s48
      %p52 = scmp.eq.s32.totalorder %s12, 0
      %p53 = por %p51, %p52
      %p54 = scmp.ne.s32.totalorder %s46, %s48
      %p55 = scmp.eq.s32.totalorder %s17, 1
      %p56 = por %p54, %p55
      %p57 = scmp.ne.s32.totalorder %s48, %s49
      %p58 = scmp.eq.s32.totalorder %s17, 0
      %p59 = por %p57, %p58
      %p60 = scmp.ne.s32.totalorder %s48, %s49
      %p61 = scmp.eq.s32.totalorder %s18, 1
      %p62 = por %p60, %p61
      %p64 = scmp.ne.s32.totalorder %s49, %s63
      %p65 = scmp.eq.s32.totalorder %s18, 0
      %p66 = por %p64, %p65
      %s68 = sadd.s32 %s67, 1
      %p71 = scmp.eq.s32.totalorder %s12, 1
      %p72 = scmp.ne.s32.totalorder %s67, %s69
      %p73 = scmp.eq.s32.totalorder %s12, 0
      %p74 = por %p72, %p73
      %p75 = scmp.ne.s32.totalorder %s67, %s69
      %p76 = scmp.eq.s32.totalorder %s17, 1
      %p77 = por %p75, %p76
      %p78 = scmp.ne.s32.totalorder %s69, %s70
      %p79 = scmp.eq.s32.totalorder %s17, 0
      %p80 = por %p78, %p79
      %p81 = scmp.ne.s32.totalorder %s69, %s70
      %p82 = scmp.eq.s32.totalorder %s18, 1
      %p83 = por %p81, %p82
      %p85 = scmp.ne.s32.totalorder %s70, %s84
      %p86 = scmp.eq.s32.totalorder %s18, 0
      %p87 = por %p85, %p86
      %s88 = ssub.s32 %s12, %s19
      %p89 = scmp.eq.s32.totalorder %s88, 0
      %s91 = sadd.s32 %s90, 1
      %s92 = scalar_select %p89, %s90, %s91
      %p95 = pneg %p89
      %p96 = scmp.eq.s32.totalorder %s12, 1
      %p97 = por %p95, %p96
      %p98 = scmp.ne.s32.totalorder %s90, %s93
      %p99 = scmp.eq.s32.totalorder %s12, 0
      %p100 = por %p98, %p99
      %p101 = scmp.ne.s32.totalorder %s90, %s93
      %p102 = scmp.eq.s32.totalorder %s17, 1
      %p103 = por %p101, %p102
      %p104 = scmp.ne.s32.totalorder %s93, %s94
      %p105 = scmp.eq.s32.totalorder %s17, 0
      %p106 = por %p104, %p105
      %p107 = scmp.ne.s32.totalorder %s93, %s94
      %p108 = scmp.eq.s32.totalorder %s18, 1
      %p109 = por %p107, %p108
      %p111 = scmp.ne.s32.totalorder %s94, %s110
      %p112 = scmp.eq.s32.totalorder %s18, 0
      %p113 = por %p111, %p112
      %p114 = scmp.le.s32.totalorder 1, %s12
      %p115 = scmp.lt.s32.totalorder %s12, 3
      %p116 = pnand %p114, %p115
      %p117 = pneg %p116
      // Predicated region
      $region9: #{tpu_custom_call.1} parent=5 // pred_check
        _
      $region10: #{tpu_custom_call.1} parent=5 // pred_check_branch
        %119 = sbr.rel (%p116) target = $region12
      $region11: #{tpu_custom_call.1} parent=5 // pred_region
        %s120 = ssub.s32 %s12, 1
        // Predicated region
        $region13: #{tpu_custom_call.1} parent=11 // pred_check
          %p121 = pneg %p59
        $region14: #{tpu_custom_call.1} parent=11 // pred_check_branch
          %123 = sbr.rel (%p121) target = $region16
        $region15: #{tpu_custom_call.1} parent=11 // pred_region
          _
        $region16: #{tpu_custom_call.1} parent=11 // pred_fallthru
          _
        // Predicated region
        $region17: #{tpu_custom_call.1} parent=11 // pred_check
          %p124 = pneg %p80
        $region18: #{tpu_custom_call.1} parent=11 // pred_check_branch
          %126 = sbr.rel (%p124) target = $region20
        $region19: #{tpu_custom_call.1} parent=11 // pred_region
          _
        $region20: #{tpu_custom_call.1} parent=11 // pred_fallthru
          _
      $region12: #{tpu_custom_call.1} parent=5 // pred_fallthru
        _
      %p127 = scmp.lt.s32.totalorder %s12, 2
      // Predicated region
      $region21: #{tpu_custom_call.1} parent=5 // pred_check
        %p128 = pneg %p127
      $region22: #{tpu_custom_call.1} parent=5 // pred_check_branch
        %130 = sbr.rel (%p128) target = $region24
      $region23: #{tpu_custom_call.1} parent=5 // pred_region
        // Predicated region
        $region25: #{tpu_custom_call.1} parent=23 // pred_check
          %p131 = pneg %p32
        $region26: #{tpu_custom_call.1} parent=23 // pred_check_branch
          %133 = sbr.rel (%p131) target = $region28
        $region27: #{tpu_custom_call.1} parent=23 // pred_region
          %p134 = scmp.lt.s32.totalorder %s12, 1
          %s135 = scalar_select %p134, %s12, 1
          %s136 = smul.addr %s135, 10
          %s137 = smul.addr %s136, 8
          %s138 = scalar_lea.vmem %s0, %s137
        $region28: #{tpu_custom_call.1} parent=23 // pred_fallthru
          _
      $region24: #{tpu_custom_call.1} parent=5 // pred_fallthru
        _
      %p139 = scmp.le.s32.totalorder 1, %s12
      %p140 = scmp.lt.s32.totalorder %s12, 3
      %p141 = pnand %p139, %p140
      %p142 = pneg %p141
      // Predicated region
      $region29: #{tpu_custom_call.1} parent=5 // pred_check
        _
      $region30: #{tpu_custom_call.1} parent=5 // pred_check_branch
        %144 = sbr.rel (%p141) target = $region32
      $region31: #{tpu_custom_call.1} parent=5 // pred_region
        %s145 = ssub.s32 %s12, 1
        %p146 = scmp.lt.s32.totalorder %s17, 1
        %s147 = scalar_select %p146, %s17, 1
        %s148 = smul.addr %s147, 10
        %s149 = smul.addr %s148, 8
        %s150 = scalar_lea.vmem %s0, %s149
        %p151 = pneg %p38
        %p152 = pneg %p35
        %p153 = pneg %p59
        %p154 = pneg %p56
        %p155 = pneg %p80
        %p156 = pneg %p77
        %p157 = pneg %p106
        %p158 = pneg %p103
        %s159 = sand.u32 %s93, 1
        %s160 = scalar_lea.sflag [#allocation3], %s159
        %s161 = sand.u32 %s93, 1
        %s162 = smul.addr %s161, 16
        %s163 = scalar_lea.vmem [#allocation2], %s162
        %p164 = scmp.lt.s32.totalorder %s17, 1
        %s165 = scalar_select %p164, %s17, 1
        %s166 = smul.addr %s165, 10
        %s167 = smul.addr %s166, 8
        %s168 = scalar_lea.vmem %s0, %s167
        %v169 = vld [vmem:[%s1] sm:$0xff]
        %v170 = vmul.f32 %v169, 0.16666667
        %v171 = vld [vmem:[%s2] sm:$0xff]
        %v172 = vld [vmem:[%s168] sm:$0xff]
        %v173 = vld [vmem:[%s168 + $0x8] sm:$0xff]
        %v174 = vld [vmem:[%s168 + $0x10] sm:$0xff]
        %v175 = vld [vmem:[%s168 + $0x18] sm:$0xff]
        %v176 = vld [vmem:[%s168 + $0x20] sm:$0xff]
        %v177 = vld [vmem:[%s168 + $0x28] sm:$0xff]
        %v178 = vld [vmem:[%s168 + $0x30] sm:$0xff]
        %v179 = vld [vmem:[%s168 + $0x38] sm:$0xff]
        %v180 = vld [vmem:[%s168 + $0x40] sm:$0xf]
        %v181 = vld [vmem:[%s168 + $0x48] sm:$0xf]
        %183 = vset.pattern.permute.xlu0 0
        %184 = vperm.xlu0 %183, %v171
        %v185 = vpop.permute.xlu0 %184
        %vm187 = vcmask 293888
        %v189 = vsel %vm187, %v170, 0
        %vm191 = vcmask 1043456
        %v193 = vsel %vm191, %v180, 0
        %v196 = vsel %vm191, %v181, 0
        %198 = vmatprep.subr.mxu0 %v173
        %199 = vmatpush1.msra.mxu0 %v172
        %200 = vmatprep.subr.mxu0 %v175
        %201 = vmatpush1.msra.mxu0 %v174
        %202 = vmatprep.subr.mxu0 %v177
        %203 = vmatpush1.msra.mxu0 %v176
        %204 = vmatprep.subr.mxu0 %v179
        %205 = vmatpush1.msra.mxu0 %v178
        %206 = vmatprep.subr.mxu0 %v196
        %207 = vmatpush1.msra.mxu0 %v193
        %208 = vmatprep.subr.mxu0 0.0
        %209 = vmatpush1.msra.mxu0 0.0
        %210 = vmatprep.subr.mxu0 0.0
        %211 = vmatpush1.msra.mxu0 0.0
        %212 = vmatprep.subr.mxu0 0.0
        %213 = vmatpush1.msra.mxu0 0.0
        %214 = vmatprep.subr.mxu0 0.0
        %215 = vmatpush1.msra.mxu0 0.0
        %216 = vmatprep.subr.mxu0 0.0
        %217 = vmatpush1.msra.mxu0 0.0
        %218 = vmatprep.subr.mxu0 0.0
        %219 = vmatpush1.msra.mxu0 0.0
        %220 = vmatprep.subr.mxu0 0.0
        %221 = vmatpush1.msra.mxu0 0.0
        %222 = vmatprep.subr.mxu0 0.0
        %223 = vmatpush1.msra.mxu0 0.0
        %224 = vmatprep.subr.mxu0 0.0
        %225 = vmatpush1.msra.mxu0 0.0
        %226 = vmatprep.subr.mxu0 0.0
        %227 = vmatpush1.msra.mxu0 0.0
        %228 = vmatprep.subr.mxu0 0.0
        %229 = vmatpush1.msra.mxu0 0.0
        %230 = vmatprep.subr.mxu0 0.0
        %231 = vmatpush1.msra.mxu0 0.0
        %232 = vmatprep.subr.mxu0 0.0
        %233 = vmatpush1.msra.mxu0 0.0
        %234 = vmatprep.subr.mxu0 0.0
        %235 = vmatpush1.msra.mxu0 0.0
        %236 = vmatprep.subr.mxu0 0.0
        %237 = vmatpush1.msra.mxu0 0.0
        %238 = vmatprep.subr.mxu0 0.0
        %239 = vmatpush1.msra.mxu0 0.0
        %240 = vmatprep.subr.mxu0 0.0
        %241 = vmatpush1.msra.mxu0 0.0
        %242 = vmatprep.subr.mxu0 0.0
        %243 = vmatpush1.msra.mxu0 0.0
        %244 = vmatprep.subr.mxu0 0.0
        %245 = vmatpush1.msra.mxu0 0.0
        %246 = vmatprep.subr.mxu0 0.0
        %247 = vmatpush1.msra.mxu0 0.0
        %248 = vmatprep.subr.mxu0 0.0
        %249 = vmatpush1.msra.mxu0 0.0
        %250 = vmatprep.subr.mxu0 0.0
        %251 = vmatpush1.msra.mxu0 0.0
        %252 = vmatprep.subr.mxu0 0.0
        %253 = vmatpush1.msra.mxu0 0.0
        %254 = vmatprep.subr.mxu0 0.0
        %255 = vmatpush1.msra.mxu0 0.0
        %256 = vmatprep.subr.mxu0 0.0
        %257 = vmatpush1.msra.mxu0 0.0
        %258 = vmatprep.subr.mxu0 0.0
        %259 = vmatpush1.msra.mxu0 0.0
        %260 = vmatprep.subr.mxu0 0.0
        %261 = vmatpush1.msra.mxu0 0.0
        %262 = vmatprep.mubr.f32.mxu0 0.0
        %263 = vmatmul.mubr.f32.gmra.mrb[0].mxu0 %v189
        %v264 = vpop.f32.mrb[0].mxu0
        %v265 = vadd.f32 %v185, %v264
        %v266 = vpop.f32.mrb[0].mxu0
        %v267 = vadd.f32 %v185, %v266
        %268 = vdwg.mxu0
        %269 = vst [vmem:[%s163] sm:$0xff] %v265
        %270 = vst [vmem:[%s163 + $0x8] sm:$0xff] %v267
        %s271 = sand.u32 %s93, 1
        %s272 = scalar_lea.sflag [#allocation3], %s271
        %s273 = sand.u32 %s93, 1
        %s274 = smul.addr %s273, 16
        %s275 = scalar_lea.vmem [#allocation2], %s274
        // Predicated region
        $region33: #{tpu_custom_call.1} parent=31 // pred_check
          %p276 = pneg %p103
        $region34: #{tpu_custom_call.1} parent=31 // pred_check_branch
          %278 = sbr.rel (%p276) target = $region36
        $region35: #{tpu_custom_call.1} parent=31 // pred_region
          %s280 = ssub.s32 256, 256
          %281 = vsyncadd %s272, %s280
          %s282 = smul.addr %s17, 2
          %s283 = smul.addr %s282, 128
          %s284 = scalar_lea.hbm %s3, %s283
          %s286 = sshll.u32 %s275, 4
          %s287 = int_to_ptr.vmem [resolvable:$true] %s286
          %289 = dma.vmem_to_hbm [thread:$0]  %s287, 256, %s284, %s272
        $region36: #{tpu_custom_call.1} parent=31 // pred_fallthru
          _
      $region32: #{tpu_custom_call.1} parent=5 // pred_fallthru
        _
      %p290 = scmp.le.s32.totalorder 2, %s12
      // Predicated region
      $region37: #{tpu_custom_call.1} parent=5 // pred_check
        %p291 = pneg %p290
      $region38: #{tpu_custom_call.1} parent=5 // pred_check_branch
        %293 = sbr.rel (%p291) target = $region40
      $region39: #{tpu_custom_call.1} parent=5 // pred_region
        %s294 = ssub.s32 %s12, 2
        // Predicated region
        $region41: #{tpu_custom_call.1} parent=39 // pred_check
          %p295 = pneg %p109
        $region42: #{tpu_custom_call.1} parent=39 // pred_check_branch
          %297 = sbr.rel (%p295) target = $region44
        $region43: #{tpu_custom_call.1} parent=39 // pred_region
          %s298 = sand.u32 %s94, 1
          %s299 = scalar_lea.sflag [#allocation3], %s298
          %s300 = sand.u32 %s94, 1
          %s301 = smul.addr %s300, 16
          %s302 = scalar_lea.vmem [#allocation2], %s301
          %303 = dma.done %s299, 256
        $region44: #{tpu_custom_call.1} parent=39 // pred_fallthru
          _
      $region40: #{tpu_custom_call.1} parent=5 // pred_fallthru
        _
    $region6: #{tpu_custom_call.1} parent=1 // loop_footer
      %s16 = sadd.s32 1, %s12
    $region7: #{tpu_custom_call.1} parent=1 // loop_footer_branch
      %11 = sbr.rel target = $region3
    $region8: #{tpu_custom_call.1} parent=1 // loop_exit
      _
    %304 = vsyncpa [#allocation3], 1
    %s305 = scalar_lea.sflag [#allocation3], 1
    %306 = vsyncpa %s305, 1

</llo_original>
